<compile_context>
chip_gen: v7x
topology: tpu7x:2x2x1
jax: 0.10.0
libtpu: 0.0.40
codegen_flags: <defaults>
</compile_context>

<pallas_src>
import functools

import jax
import jax.numpy as jnp
from jax import lax
from jax.experimental import pallas as pl
from jax.experimental.pallas import tpu as pltpu


def _transe_tile_kernel(ph_i, pr_i, pt_i, nh_i, nr_i, nt_i,   # SMEM prefetch
                        ent_ref, rel_ref,                      # VMEM tables
                        out_ref,                               # per-tile partial
                        *, margin, tile_b, total_b):
    tile = pl.program_id(0)
    base = tile * tile_b

    def row_fn(j, acc):
        g = base + j
        # fused nn.Embedding lookups: dynamic row loads from the VMEM tables,
        # driven by the scalar-prefetched SMEM index vectors.
        ph = ent_ref[pl.ds(ph_i[g], 1), :]
        pr = rel_ref[pl.ds(pr_i[g], 1), :]
        pt = ent_ref[pl.ds(pt_i[g], 1), :]
        nh = ent_ref[pl.ds(nh_i[g], 1), :]
        nr = rel_ref[pl.ds(nr_i[g], 1), :]
        nt = ent_ref[pl.ds(nt_i[g], 1), :]
        # translation residuals h + r - t (VPU)
        pos_diff = ph + pr - pt
        neg_diff = nh + nr - nt
        # L2 norm over the (zero-padded) embedding dim
        pos_score = jnp.sqrt(jnp.sum(pos_diff * pos_diff))
        neg_score = jnp.sqrt(jnp.sum(neg_diff * neg_diff))
        hinge = jnp.maximum(margin + pos_score - neg_score, 0.0)
        # mask rows that are batch padding (g >= true batch size)
        return acc + jnp.where(g < total_b, hinge, jnp.float32(0.0))

    tile_sum = lax.fori_loop(0, tile_b, row_fn, jnp.float32(0.0))
    # lane-dense splat of the per-tile partial sum -> unmasked full-tile store
    out_ref[...] = jnp.full(out_ref.shape, tile_sum, dtype=out_ref.dtype)


def transe_forward(entity_emb, relation_emb, margin,
                   pos_h, pos_r, pos_t, neg_h, neg_r, neg_t, *, tile_b=8):
    B = pos_h.shape[0]
    E, D = entity_emb.shape
    R = relation_emb.shape[0]

    # Lane-align the embedding dim: zero-pad D to a multiple of 128.
    d_pad = pl.cdiv(D, 128) * 128
    if d_pad != D:
        entity_emb = jnp.pad(entity_emb, ((0, 0), (0, d_pad - D)))
        relation_emb = jnp.pad(relation_emb, ((0, 0), (0, d_pad - D)))

    num_tiles = pl.cdiv(B, tile_b)
    b_pad = num_tiles * tile_b

    def prep_idx(idx):
        idx = jnp.asarray(idx, jnp.int32)
        return jnp.pad(idx, (0, b_pad - B))   # pad with valid index 0; masked in-kernel

    idx_args = tuple(prep_idx(a) for a in
                     (pos_h, pos_r, pos_t, neg_h, neg_r, neg_t))

    kernel = functools.partial(_transe_tile_kernel, margin=float(margin),
                               tile_b=int(tile_b), total_b=int(B))

    partials = pl.pallas_call(
        kernel,
        out_shape=jax.ShapeDtypeStruct((num_tiles, 8, 128), jnp.float32),
        grid_spec=pltpu.PrefetchScalarGridSpec(
            num_scalar_prefetch=6,
            grid=(num_tiles,),
            in_specs=[
                # full-table VMEM blocks; constant block index -> fetched once
                pl.BlockSpec((E, d_pad), lambda i, *_: (0, 0)),
                pl.BlockSpec((R, d_pad), lambda i, *_: (0, 0)),
            ],
            out_specs=pl.BlockSpec((1, 8, 128), lambda i, *_: (i, 0, 0)),
        ),
        compiler_params=pltpu.CompilerParams(
            dimension_semantics=("parallel",)),
    )(*idx_args, entity_emb, relation_emb)

    # finish the mean over the TRUE batch size in the wrapper
    return jnp.sum(partials[:, 0, 0]) / B


def init_transe_params(key, num_entities, num_relations, embedding_dim):
    """Deterministic parameter init mirroring the PyTorch __init__:
    xavier_uniform_ for both tables, then L2-row-normalize entity table."""
    k_ent, k_rel = jax.random.split(key)

    def xavier_uniform(k, fan_out, fan_in):
        bound = jnp.sqrt(6.0 / (fan_in + fan_out))
        return jax.random.uniform(k, (fan_out, fan_in), jnp.float32,
                                  minval=-bound, maxval=bound)

    ent = xavier_uniform(k_ent, num_entities, embedding_dim)
    rel = xavier_uniform(k_rel, num_relations, embedding_dim)
    # F.normalize(p=2, dim=1) on entity embeddings
    ent = ent / jnp.maximum(jnp.linalg.norm(ent, axis=1, keepdims=True), 1e-12)
    return ent, rel


if __name__ == "__main__":
    num_entities = 64
    num_relations = 16
    embedding_dim = 100   # module default; kernel zero-pads to 128 lanes
    batch = 13            # not a multiple of tile_b -> exercises batch masking
    margin = 1.0

    key = jax.random.PRNGKey(0)
    k_params, k_ph, k_pr, k_pt, k_nh, k_nr, k_nt = jax.random.split(key, 7)

    entity_emb, relation_emb = init_transe_params(
        k_params, num_entities, num_relations, embedding_dim)

    pos_h = jax.random.randint(k_ph, (batch,), 0, num_entities, jnp.int32)
    pos_r = jax.random.randint(k_pr, (batch,), 0, num_relations, jnp.int32)
    pos_t = jax.random.randint(k_pt, (batch,), 0, num_entities, jnp.int32)
    neg_h = jax.random.randint(k_nh, (batch,), 0, num_entities, jnp.int32)
    neg_r = jax.random.randint(k_nr, (batch,), 0, num_relations, jnp.int32)
    neg_t = jax.random.randint(k_nt, (batch,), 0, num_entities, jnp.int32)

    loss = transe_forward(entity_emb, relation_emb, margin,
                          pos_h, pos_r, pos_t, neg_h, neg_r, neg_t, tile_b=8)
    jax.block_until_ready(loss)

    # reference check in plain JAX (unpadded tables)
    def ref():
        ph = entity_emb[pos_h]; pr = relation_emb[pos_r]; pt = entity_emb[pos_t]
        nh = entity_emb[neg_h]; nr = relation_emb[neg_r]; nt = entity_emb[neg_t]
        ps = jnp.linalg.norm(ph + pr - pt, axis=1)
        ns = jnp.linalg.norm(nh + nr - nt, axis=1)
        return jnp.mean(jnp.maximum(margin + ps - ns, 0.0))

    ref_loss = ref()
    assert jnp.allclose(loss, ref_loss, rtol=1e-5, atol=1e-5), (loss, ref_loss)
    print("KERNEL_OK")
</pallas_src>

<mosaic_0001>
module attributes {stable_mosaic.version = 11 : i64} {
  func.func @_transe_tile_kernel(%arg0: i32, %arg1: memref<16xi32, #tpu.memory_space<smem>>, %arg2: memref<16xi32, #tpu.memory_space<smem>>, %arg3: memref<16xi32, #tpu.memory_space<smem>>, %arg4: memref<16xi32, #tpu.memory_space<smem>>, %arg5: memref<16xi32, #tpu.memory_space<smem>>, %arg6: memref<16xi32, #tpu.memory_space<smem>>, %arg7: memref<64x128xf32, #tpu.memory_space<vmem>>, %arg8: memref<16x128xf32, #tpu.memory_space<vmem>>, %arg9: memref<1x8x128xf32, #tpu.memory_space<vmem>>) attributes {dimension_semantics = [#tpu.dimension_semantics<parallel>], iteration_bounds = array<i64: 2>, scalar_prefetch = 6 : i64, scratch_operands = 0 : i64, tpu.core_type = #tpu.core_type<tc>, window_params = [{pipeline_mode = #tpu.pipeline_mode<synchronous>, transform_indices = @transform_0, window_bounds = array<i64: 64, 128>}, {pipeline_mode = #tpu.pipeline_mode<synchronous>, transform_indices = @transform_1, window_bounds = array<i64: 16, 128>}, {transform_indices = @transform_2, window_bounds = array<i64: 1, 8, 128>}]} {
    %c8_i32 = arith.constant 8 : i32
    %0 = arith.muli %arg0, %c8_i32 : i32
    %cst = arith.constant 0.000000e+00 : f32
    %c0_i32 = arith.constant 0 : i32
    %c8_i32_0 = arith.constant 8 : i32
    %1 = arith.addi %c0_i32, %c8_i32_0 : i32
    %c1_i32 = arith.constant 1 : i32
    %2 = scf.for %arg10 = %c0_i32 to %1 step %c1_i32 iter_args(%arg11 = %cst) -> (f32)  : i32 {
      %5 = arith.addi %0, %arg10 : i32
      %6 = arith.index_cast %5 : i32 to index
      %7 = memref.load %arg1[%6] : memref<16xi32, #tpu.memory_space<smem>>
      %8 = arith.index_cast %7 : i32 to index
      %c0_4 = arith.constant 0 : index
      %9 = vector.load %arg7[%8, %c0_4] : memref<64x128xf32, #tpu.memory_space<vmem>>, vector<1x128xf32>
      %10 = arith.index_cast %5 : i32 to index
      %11 = memref.load %arg2[%10] : memref<16xi32, #tpu.memory_space<smem>>
      %12 = arith.index_cast %11 : i32 to index
      %c0_5 = arith.constant 0 : index
      %13 = vector.load %arg8[%12, %c0_5] : memref<16x128xf32, #tpu.memory_space<vmem>>, vector<1x128xf32>
      %14 = arith.index_cast %5 : i32 to index
      %15 = memref.load %arg3[%14] : memref<16xi32, #tpu.memory_space<smem>>
      %16 = arith.index_cast %15 : i32 to index
      %c0_6 = arith.constant 0 : index
      %17 = vector.load %arg7[%16, %c0_6] : memref<64x128xf32, #tpu.memory_space<vmem>>, vector<1x128xf32>
      %18 = arith.index_cast %5 : i32 to index
      %19 = memref.load %arg4[%18] : memref<16xi32, #tpu.memory_space<smem>>
      %20 = arith.index_cast %19 : i32 to index
      %c0_7 = arith.constant 0 : index
      %21 = vector.load %arg7[%20, %c0_7] : memref<64x128xf32, #tpu.memory_space<vmem>>, vector<1x128xf32>
      %22 = arith.index_cast %5 : i32 to index
      %23 = memref.load %arg5[%22] : memref<16xi32, #tpu.memory_space<smem>>
      %24 = arith.index_cast %23 : i32 to index
      %c0_8 = arith.constant 0 : index
      %25 = vector.load %arg8[%24, %c0_8] : memref<16x128xf32, #tpu.memory_space<vmem>>, vector<1x128xf32>
      %26 = arith.index_cast %5 : i32 to index
      %27 = memref.load %arg6[%26] : memref<16xi32, #tpu.memory_space<smem>>
      %28 = arith.index_cast %27 : i32 to index
      %c0_9 = arith.constant 0 : index
      %29 = vector.load %arg7[%28, %c0_9] : memref<64x128xf32, #tpu.memory_space<vmem>>, vector<1x128xf32>
      %30 = arith.addf %9, %13 : vector<1x128xf32>
      %31 = arith.subf %30, %17 : vector<1x128xf32>
      %32 = arith.addf %21, %25 : vector<1x128xf32>
      %33 = arith.subf %32, %29 : vector<1x128xf32>
      %34 = arith.mulf %31, %31 : vector<1x128xf32>
      %35 = vector.shape_cast %34 : vector<1x128xf32> to vector<1x1x128xf32>
      %cst_10 = arith.constant dense<0.000000e+00> : vector<1xf32>
      %36 = vector.multi_reduction <add>, %35, %cst_10 [1, 2] : vector<1x1x128xf32> to vector<1xf32>
      %37 = vector.shape_cast %36 : vector<1xf32> to vector<1x1x1xf32>
      %38 = vector.extract %37[0, 0, 0] : f32 from vector<1x1x1xf32>
      %39 = math.sqrt %38 : f32
      %40 = arith.mulf %33, %33 : vector<1x128xf32>
      %41 = vector.shape_cast %40 : vector<1x128xf32> to vector<1x1x128xf32>
      %cst_11 = arith.constant dense<0.000000e+00> : vector<1xf32>
      %42 = vector.multi_reduction <add>, %41, %cst_11 [1, 2] : vector<1x1x128xf32> to vector<1xf32>
      %43 = vector.shape_cast %42 : vector<1xf32> to vector<1x1x1xf32>
      %44 = vector.extract %43[0, 0, 0] : f32 from vector<1x1x1xf32>
      %45 = math.sqrt %44 : f32
      %cst_12 = arith.constant 1.000000e+00 : f32
      %46 = arith.addf %cst_12, %39 : f32
      %47 = arith.subf %46, %45 : f32
      %cst_13 = arith.constant 0.000000e+00 : f32
      %48 = arith.maximumf %47, %cst_13 : f32
      %c13_i32 = arith.constant 13 : i32
      %49 = arith.cmpi slt, %5, %c13_i32 : i32
      %cst_14 = arith.constant 0.000000e+00 : f32
      %50 = arith.select %49, %48, %cst_14 : f32
      %51 = arith.addf %arg11, %50 : f32
      scf.yield %51 : f32
    }
    %c8_i32_1 = arith.constant 8 : i32
    %3 = vector.broadcast %2 : f32 to vector<1x8x128xf32>
    %c0 = arith.constant 0 : index
    %c0_2 = arith.constant 0 : index
    %c0_3 = arith.constant 0 : index
    %4 = vector.load %arg9[%c0, %c0_2, %c0_3] : memref<1x8x128xf32, #tpu.memory_space<vmem>>, vector<1x8x128xf32>
    tpu.vector_store %arg9[%c0, %c0_2, %c0_3], %3 {strides = array<i32>} : memref<1x8x128xf32, #tpu.memory_space<vmem>>, vector<1x8x128xf32>,
    return
  }
  func.func @transform_0(%arg0: i32, %arg1: memref<16xi32, #tpu.memory_space<smem>>, %arg2: memref<16xi32, #tpu.memory_space<smem>>, %arg3: memref<16xi32, #tpu.memory_space<smem>>, %arg4: memref<16xi32, #tpu.memory_space<smem>>, %arg5: memref<16xi32, #tpu.memory_space<smem>>, %arg6: memref<16xi32, #tpu.memory_space<smem>>) -> (i32, i32) {
    %c0_i32 = arith.constant 0 : i32
    %c0_i32_0 = arith.constant 0 : i32
    %c0_i32_1 = arith.constant 0 : i32
    return %c0_i32, %c0_i32_0 : i32, i32
  }
  func.func @transform_1(%arg0: i32, %arg1: memref<16xi32, #tpu.memory_space<smem>>, %arg2: memref<16xi32, #tpu.memory_space<smem>>, %arg3: memref<16xi32, #tpu.memory_space<smem>>, %arg4: memref<16xi32, #tpu.memory_space<smem>>, %arg5: memref<16xi32, #tpu.memory_space<smem>>, %arg6: memref<16xi32, #tpu.memory_space<smem>>) -> (i32, i32) {
    %c0_i32 = arith.constant 0 : i32
    %c0_i32_0 = arith.constant 0 : i32
    %c0_i32_1 = arith.constant 0 : i32
    return %c0_i32, %c0_i32_0 : i32, i32
  }
  func.func @transform_2(%arg0: i32, %arg1: memref<16xi32, #tpu.memory_space<smem>>, %arg2: memref<16xi32, #tpu.memory_space<smem>>, %arg3: memref<16xi32, #tpu.memory_space<smem>>, %arg4: memref<16xi32, #tpu.memory_space<smem>>, %arg5: memref<16xi32, #tpu.memory_space<smem>>, %arg6: memref<16xi32, #tpu.memory_space<smem>>) -> (i32, i32, i32) {
    %c0_i32 = arith.constant 0 : i32
    %c0_i32_0 = arith.constant 0 : i32
    %c0_i32_1 = arith.constant 0 : i32
    return %arg0, %c0_i32, %c0_i32_0 : i32, i32, i32
  }
}

</mosaic_0001>

<llo_original>
// kernel: tpu_custom_call.1
$region0: #{tpu_custom_call.1}
  #allocation0 [shape = 'u32[]', space=smem, size = 0x4, offset = 0x4, fixed_abs, tag = 'smem constant byte address 0x4 - core index']
  #allocation1 [shape = 'u32[144,128]{1,0:T(1,128)}', space=vmem, size = 0x12000, scoped, tag = 'internal scratch']
  #allocation2 [shape = 's32[1]{0}', space=sflag, size = 0x4, scoped, tag = 'scoped memory for tpu_custom_call.1']
  #allocation3 [shape = 'u8[512]{0}', space=smem, size = 0x200, scoped, tag = 'prefetched SMEM operand 0']
  #allocation4 [shape = 'u8[512]{0}', space=smem, size = 0x200, scoped, tag = 'prefetched SMEM operand 1']
  #allocation5 [shape = 'u8[512]{0}', space=smem, size = 0x200, scoped, tag = 'prefetched SMEM operand 2']
  #allocation6 [shape = 'u8[512]{0}', space=smem, size = 0x200, scoped, tag = 'prefetched SMEM operand 3']
  #allocation7 [shape = 'u8[512]{0}', space=smem, size = 0x200, scoped, tag = 'prefetched SMEM operand 4']
  #allocation8 [shape = 'u8[512]{0}', space=smem, size = 0x200, scoped, tag = 'prefetched SMEM operand 5']
  %s0 = inlined_call_operand.hbm [shape: s32[16], index: 0, kind: input, shape index: {}]
  %s1 = inlined_call_operand.vmem [shape: s32[16], index: 1, kind: input, shape index: {}]
  %s2 = inlined_call_operand.vmem [shape: s32[16], index: 2, kind: input, shape index: {}]
  %s3 = inlined_call_operand.vmem [shape: s32[16], index: 3, kind: input, shape index: {}]
  %s4 = inlined_call_operand.vmem [shape: s32[16], index: 4, kind: input, shape index: {}]
  %s5 = inlined_call_operand.vmem [shape: s32[16], index: 5, kind: input, shape index: {}]
  %s6 = inlined_call_operand.hbm [shape: f32[64,128], index: 6, kind: input, shape index: {}]
  %s7 = inlined_call_operand.vmem [shape: f32[16,128], index: 7, kind: input, shape index: {}]
  %s8 = inlined_call_operand.hbm [shape: f32[2,8,128], index: 8, kind: output, shape index: {}]
  %s9 = sld [smem:[#allocation0]]
  $region52: #{tpu_custom_call.1} parent=0
    _
  %s11 = ssub.s32 1, %s9
  %s12 = scalar_select 0, %s11, %s9
  %14 = dma.hbm_to_smem %s0, 16, [#allocation3], [#allocation2]
  %s15 = sshll.u32 %s1, 4
  %s16 = int_to_ptr.vmem [resolvable:$true] %s15
  %18 = dma.vmem_to_smem %s16, 16, [#allocation4], [#allocation2]
  %s19 = sshll.u32 %s2, 4
  %s20 = int_to_ptr.vmem [resolvable:$true] %s19
  %22 = dma.vmem_to_smem %s20, 16, [#allocation5], [#allocation2]
  %s23 = sshll.u32 %s3, 4
  %s24 = int_to_ptr.vmem [resolvable:$true] %s23
  %26 = dma.vmem_to_smem %s24, 16, [#allocation6], [#allocation2]
  %s27 = sshll.u32 %s4, 4
  %s28 = int_to_ptr.vmem [resolvable:$true] %s27
  %30 = dma.vmem_to_smem %s28, 16, [#allocation7], [#allocation2]
  %s31 = sshll.u32 %s5, 4
  %s32 = int_to_ptr.vmem [resolvable:$true] %s31
  %34 = dma.vmem_to_smem %s32, 16, [#allocation8], [#allocation2]
  %35 = dma.done [#allocation2], 96
  %36 = sfence
  $region1: #{tpu_custom_call.1} parent=0
    #allocation9 [shape = 'u8[32768]{0}', space=vmem, size = 0x8000, scoped, tag = 'input window, operand 6, single buffered']
    #allocation10 [shape = 's32[2]{0}', space=sflag, size = 0x8, scoped, tag = 'scoped memory for tpu_custom_call.1']
    #allocation11 [shape = 's32[2]{0}', space=sflag, size = 0x8, scoped, tag = 'scoped memory for tpu_custom_call.1']
    #allocation12 [shape = 'u8[8192]{0}', space=vmem, size = 0x2000, scoped, tag = 'output window, operand 0']
    %37 = vsyncpa [#allocation10], 0
    %38 = vsyncpa [#allocation11], 0
    %s39 = scalar_lea.sflag [#allocation11], 1
    %40 = vsyncpa %s39, 0
    loop: start=0, step=1, limit=4
    $region2: #{tpu_custom_call.1} parent=1 // loop_pre_header
      _
    $region3: #{tpu_custom_call.1} parent=1 // loop_header
      %s42 = sphi 0, %s46
      %p43 = scmp.ge.s32.totalorder %s42, 4
      %s50 = sphi 0, %s50
      %s52 = sphi 0, %s50
      %s53 = sphi 0, %s52
      %s67 = sphi 0, %s53
      %s71 = sphi 0, %s71
      %s73 = sphi 0, %s71
      %s74 = sphi 0, %s73
      %s88 = sphi 0, %s74
      %s94 = sphi 0, %s96
      %s97 = sphi 0, %s94
      %s98 = sphi 0, %s97
      %s114 = sphi 0, %s98
    $region4: #{tpu_custom_call.1} parent=1 // loop_header_branch
      %45 = sbr.rel (%p43) target = $region8
    $region5: #{tpu_custom_call.1} parent=1 // loop_body
      %s47 = ssub.s32 %s42, 1
      %s48 = ssub.s32 %s42, 2
      %s49 = sadd.s32 %s42, 1
      %s51 = sadd.s32 %s50, 1
      %p54 = scmp.eq.s32.totalorder %s42, 1
      %p55 = scmp.ne.s32.totalorder %s50, %s52
      %p56 = scmp.eq.s32.totalorder %s42, 0
      %p57 = por %p55, %p56
      %p58 = scmp.ne.s32.totalorder %s50, %s52
      %p59 = scmp.eq.s32.totalorder %s47, 1
      %p60 = por %p58, %p59
      %p61 = scmp.ne.s32.totalorder %s52, %s53
      %p62 = scmp.eq.s32.totalorder %s47, 0
      %p63 = por %p61, %p62
      %p64 = scmp.ne.s32.totalorder %s52, %s53
      %p65 = scmp.eq.s32.totalorder %s48, 1
      %p66 = por %p64, %p65
      %p68 = scmp.ne.s32.totalorder %s53, %s67
      %p69 = scmp.eq.s32.totalorder %s48, 0
      %p70 = por %p68, %p69
      %s72 = sadd.s32 %s71, 1
      %p75 = scmp.eq.s32.totalorder %s42, 1
      %p76 = scmp.ne.s32.totalorder %s71, %s73
      %p77 = scmp.eq.s32.totalorder %s42, 0
      %p78 = por %p76, %p77
      %p79 = scmp.ne.s32.totalorder %s71, %s73
      %p80 = scmp.eq.s32.totalorder %s47, 1
      %p81 = por %p79, %p80
      %p82 = scmp.ne.s32.totalorder %s73, %s74
      %p83 = scmp.eq.s32.totalorder %s47, 0
      %p84 = por %p82, %p83
      %p85 = scmp.ne.s32.totalorder %s73, %s74
      %p86 = scmp.eq.s32.totalorder %s48, 1
      %p87 = por %p85, %p86
      %p89 = scmp.ne.s32.totalorder %s74, %s88
      %p90 = scmp.eq.s32.totalorder %s48, 0
      %p91 = por %p89, %p90
      %s92 = ssub.s32 %s42, %s49
      %p93 = scmp.eq.s32.totalorder %s92, 0
      %s95 = sadd.s32 %s94, 1
      %s96 = scalar_select %p93, %s94, %s95
      %p99 = pneg %p93
      %p100 = scmp.eq.s32.totalorder %s42, 1
      %p101 = por %p99, %p100
      %p102 = scmp.ne.s32.totalorder %s94, %s97
      %p103 = scmp.eq.s32.totalorder %s42, 0
      %p104 = por %p102, %p103
      %p105 = scmp.ne.s32.totalorder %s94, %s97
      %p106 = scmp.eq.s32.totalorder %s47, 1
      %p107 = por %p105, %p106
      %p108 = scmp.ne.s32.totalorder %s97, %s98
      %p109 = scmp.eq.s32.totalorder %s47, 0
      %p110 = por %p108, %p109
      %p111 = scmp.ne.s32.totalorder %s97, %s98
      %p112 = scmp.eq.s32.totalorder %s48, 1
      %p113 = por %p111, %p112
      %p115 = scmp.ne.s32.totalorder %s98, %s114
      %p116 = scmp.eq.s32.totalorder %s48, 0
      %p117 = por %p115, %p116
      %p118 = scmp.le.s32.totalorder 1, %s42
      %p119 = scmp.lt.s32.totalorder %s42, 3
      %p120 = pnand %p118, %p119
      %p121 = pneg %p120
      // Predicated region
      $region9: #{tpu_custom_call.1} parent=5 // pred_check
        _
      $region10: #{tpu_custom_call.1} parent=5 // pred_check_branch
        %123 = sbr.rel (%p120) target = $region12
      $region11: #{tpu_custom_call.1} parent=5 // pred_region
        %s124 = ssub.s32 %s42, 1
        // Predicated region
        $region13: #{tpu_custom_call.1} parent=11 // pred_check
          %p125 = pneg %p63
        $region14: #{tpu_custom_call.1} parent=11 // pred_check_branch
          %127 = sbr.rel (%p125) target = $region16
        $region15: #{tpu_custom_call.1} parent=11 // pred_region
          %s129 = ssub.s32 1024, 1024
          %130 = vsyncadd [#allocation10], %s129
          %s131 = sshll.u32 [#allocation9], 4
          %s132 = int_to_ptr.vmem [resolvable:$true] %s131
          %137 = dma.hbm_to_vmem [thread:$0]  %s6, 1024, %s132, [#allocation10], 128, 128, 8
        $region16: #{tpu_custom_call.1} parent=11 // pred_fallthru
          _
        // Predicated region
        $region17: #{tpu_custom_call.1} parent=11 // pred_check
          %p138 = pneg %p84
        $region18: #{tpu_custom_call.1} parent=11 // pred_check_branch
          %140 = sbr.rel (%p138) target = $region20
        $region19: #{tpu_custom_call.1} parent=11 // pred_region
          _
        $region20: #{tpu_custom_call.1} parent=11 // pred_fallthru
          _
      $region12: #{tpu_custom_call.1} parent=5 // pred_fallthru
        _
      %p141 = scmp.lt.s32.totalorder %s42, 2
      // Predicated region
      $region21: #{tpu_custom_call.1} parent=5 // pred_check
        %p142 = pneg %p141
      $region22: #{tpu_custom_call.1} parent=5 // pred_check_branch
        %144 = sbr.rel (%p142) target = $region24
      $region23: #{tpu_custom_call.1} parent=5 // pred_region
        _
      $region24: #{tpu_custom_call.1} parent=5 // pred_fallthru
        _
      %p145 = scmp.le.s32.totalorder 1, %s42
      %p146 = scmp.lt.s32.totalorder %s42, 3
      %p147 = pnand %p145, %p146
      %p148 = pneg %p147
      // Predicated region
      $region25: #{tpu_custom_call.1} parent=5 // pred_check
        _
      $region26: #{tpu_custom_call.1} parent=5 // pred_check_branch
        %150 = sbr.rel (%p147) target = $region28
      $region27: #{tpu_custom_call.1} parent=5 // pred_region
        %s151 = ssub.s32 %s42, 1
        // Predicated region
        $region29: #{tpu_custom_call.1} parent=27 // pred_check
          %p152 = pneg %p63
        $region30: #{tpu_custom_call.1} parent=27 // pred_check_branch
          %154 = sbr.rel (%p152) target = $region32
        $region31: #{tpu_custom_call.1} parent=27 // pred_region
          %155 = dma.done [#allocation10], 1024
        $region32: #{tpu_custom_call.1} parent=27 // pred_fallthru
          _
        %p156 = pneg %p63
        %p157 = pneg %p60
        %p158 = pneg %p84
        %p159 = pneg %p81
        %p160 = pneg %p110
        %p161 = pneg %p107
        %s162 = sand.u32 %s97, 1
        %s163 = scalar_lea.sflag [#allocation11], %s162
        %s164 = sand.u32 %s97, 1
        %s165 = smul.addr %s164, 8
        %s166 = scalar_lea.vmem [#allocation12], %s165
        %s167 = smul.u32 %s47, 8
        loop: start=0, step=1, limit=8
        $region33: #{tpu_custom_call.1} parent=27 // loop_pre_header
          _
        $region34: #{tpu_custom_call.1} parent=27 // loop_header
          %s169 = sphi 0, %s173
          %p170 = scmp.ge.s32.totalorder %s169, 8
          %s174 = sphi 0.0, %s244
        $region35: #{tpu_custom_call.1} parent=27 // loop_header_branch
          %172 = sbr.rel (%p170) target = $region39
        $region36: #{tpu_custom_call.1} parent=27 // loop_body
          %s175 = sadd.s32 %s167, %s169
          %s176 = sld [smem:[#allocation3 + %s175]]
          %s177 = scalar_lea.vmem [#allocation9], %s176
          %v178 = vld [vmem:[%s177] sm:$0x1]
          %s179 = sld [smem:[#allocation4 + %s175]]
          %s180 = scalar_lea.vmem %s7, %s179
          %v181 = vld [vmem:[%s180] sm:$0x1]
          %s182 = sld [smem:[#allocation5 + %s175]]
          %s183 = scalar_lea.vmem [#allocation9], %s182
          %v184 = vld [vmem:[%s183] sm:$0x1]
          %s185 = sld [smem:[#allocation6 + %s175]]
          %s186 = scalar_lea.vmem [#allocation9], %s185
          %v187 = vld [vmem:[%s186] sm:$0x1]
          %s188 = sld [smem:[#allocation7 + %s175]]
          %s189 = scalar_lea.vmem %s7, %s188
          %v190 = vld [vmem:[%s189] sm:$0x1]
          %s191 = sld [smem:[#allocation8 + %s175]]
          %s192 = scalar_lea.vmem [#allocation9], %s191
          %v193 = vld [vmem:[%s192] sm:$0x1]
          %v194 = vadd.f32 %v178, %v181
          %v195 = vsub.f32 %v194, %v184
          %v196 = vadd.f32 %v187, %v190
          %v197 = vsub.f32 %v196, %v193
          %v198 = vmul.f32 %v195, %v195
          %vm199 = vcmask 1040384
          %v200 = vsel %vm199, %v198, 0.0
          %201 = vadd.xlane.f32.xlu0 %v200
          %v202 = vpop.xlane.xlu0 %201
          %v203 = vrot.slane %v202, 4
          %v204 = vadd.f32 %v202, %v203
          %v205 = vrot.slane %v204, 2
          %v206 = vadd.f32 %v204, %v205
          %v207 = vrot.slane %v206, 1
          %v208 = vadd.f32 %v206, %v207
          %s209 = vtos %v208
          %v210 = vstv %s209
          %v211 = vrsqrt.pop %v210
          %v212 = vmul.f32 %v210, %v211
          %vm213 = vcmp.eq.f32.partialorder %v210, inf
          %v214 = vsel %vm213, %v210, %v212
          %vm215 = vcmp.eq.f32.partialorder %v210, 0.0
          %v216 = vand.u32 %v210, 2147483648
          %v217 = vsel %vm215, %v216, %v214
          %s218 = vtos %v217
          %v219 = vmul.f32 %v197, %v197
          %v220 = vsel %vm199, %v219, 0.0
          %221 = vadd.xlane.f32.xlu0 %v220
          %v222 = vpop.xlane.xlu0 %221
          %v223 = vrot.slane %v222, 4
          %v224 = vadd.f32 %v222, %v223
          %v225 = vrot.slane %v224, 2
          %v226 = vadd.f32 %v224, %v225
          %v227 = vrot.slane %v226, 1
          %v228 = vadd.f32 %v226, %v227
          %s229 = vtos %v228
          %v230 = vstv %s229
          %v231 = vrsqrt.pop %v230
          %v232 = vmul.f32 %v230, %v231
          %vm233 = vcmp.eq.f32.partialorder %v230, inf
          %v234 = vsel %vm233, %v230, %v232
          %vm235 = vcmp.eq.f32.partialorder %v230, 0.0
          %v236 = vand.u32 %v230, 2147483648
          %v237 = vsel %vm235, %v236, %v234
          %s238 = vtos %v237
          %s239 = sadd.f32 %s218, 1.0
          %s240 = ssub.f32 %s239, %s238
          %s241 = smax.f32 %s240, 0.0
          %p242 = scmp.lt.s32.totalorder %s175, 13
          %s243 = scalar_select %p242, %s241, 0.0
          %s244 = sadd.f32 %s174, %s243
        $region37: #{tpu_custom_call.1} parent=27 // loop_footer
          %s173 = sadd.s32 1, %s169
        $region38: #{tpu_custom_call.1} parent=27 // loop_footer_branch
          %168 = sbr.rel target = $region34
        $region39: #{tpu_custom_call.1} parent=27 // loop_exit
          _
        %v245 = vstv %s174
        %246 = vst [vmem:[%s166] sm:$0xff] %v245
        %s247 = sand.u32 %s97, 1
        %s248 = scalar_lea.sflag [#allocation11], %s247
        %s249 = sand.u32 %s97, 1
        %s250 = smul.addr %s249, 8
        %s251 = scalar_lea.vmem [#allocation12], %s250
        // Predicated region
        $region40: #{tpu_custom_call.1} parent=27 // pred_check
          %p252 = pneg %p107
        $region41: #{tpu_custom_call.1} parent=27 // pred_check_branch
          %254 = sbr.rel (%p252) target = $region43
        $region42: #{tpu_custom_call.1} parent=27 // pred_region
          %s256 = ssub.s32 128, 128
          %257 = vsyncadd %s248, %s256
          %s258 = smul.addr %s47, 128
          %s259 = scalar_lea.hbm %s8, %s258
          %s261 = sshll.u32 %s251, 4
          %s262 = int_to_ptr.vmem [resolvable:$true] %s261
          %264 = dma.vmem_to_hbm [thread:$0]  %s262, 128, %s259, %s248
        $region43: #{tpu_custom_call.1} parent=27 // pred_fallthru
          _
      $region28: #{tpu_custom_call.1} parent=5 // pred_fallthru
        _
      %p265 = scmp.le.s32.totalorder 2, %s42
      // Predicated region
      $region44: #{tpu_custom_call.1} parent=5 // pred_check
        %p266 = pneg %p265
      $region45: #{tpu_custom_call.1} parent=5 // pred_check_branch
        %268 = sbr.rel (%p266) target = $region47
      $region46: #{tpu_custom_call.1} parent=5 // pred_region
        %s269 = ssub.s32 %s42, 2
        // Predicated region
        $region48: #{tpu_custom_call.1} parent=46 // pred_check
          %p270 = pneg %p113
        $region49: #{tpu_custom_call.1} parent=46 // pred_check_branch
          %272 = sbr.rel (%p270) target = $region51
        $region50: #{tpu_custom_call.1} parent=46 // pred_region
          %s273 = sand.u32 %s98, 1
          %s274 = scalar_lea.sflag [#allocation11], %s273
          %s275 = sand.u32 %s98, 1
          %s276 = smul.addr %s275, 8
          %s277 = scalar_lea.vmem [#allocation12], %s276
          %278 = dma.done %s274, 128
        $region51: #{tpu_custom_call.1} parent=46 // pred_fallthru
          _
      $region47: #{tpu_custom_call.1} parent=5 // pred_fallthru
        _
    $region6: #{tpu_custom_call.1} parent=1 // loop_footer
      %s46 = sadd.s32 1, %s42
    $region7: #{tpu_custom_call.1} parent=1 // loop_footer_branch
      %41 = sbr.rel target = $region3
    $region8: #{tpu_custom_call.1} parent=1 // loop_exit
      _
    %279 = vsyncpa [#allocation10], 1
    %s280 = scalar_lea.sflag [#allocation10], 1
    %281 = vsyncpa %s280, 1
    %282 = vsyncpa [#allocation11], 1
    %s283 = scalar_lea.sflag [#allocation11], 1
    %284 = vsyncpa %s283, 1

</llo_original>
